<compile_context>
chip_gen: v7x
topology: tpu7x:2x2x1
jax: 0.10.0
libtpu: 0.0.40
codegen_flags: <defaults>
</compile_context>

<pallas_src>
import jax
import jax.numpy as jnp
from jax.experimental import pallas as pl
from jax.experimental.pallas import tpu as pltpu


def xor_mlp_kernel(params_ref, xt_ref, ot_ref):
    """VPU-only fused forward.

    params_ref (SMEM, f32[9]) layout:
      [0..3]  w1 row-major (in, out): w1_00, w1_01, w1_10, w1_11
      [4..5]  b1: b1_0, b1_1
      [6..7]  w2 (in, out): w2_00, w2_10
      [8]     b2_0
    xt_ref: (D_in=2, B) activations, batch on the lane axis.
    ot_ref: (N_out=1, B) output, batch on the lane axis.
    """
    x0 = xt_ref[0:1, :]   # (1, B)
    x1 = xt_ref[1:2, :]   # (1, B)

    # Hidden layer: two scalar*vector FMAs + EUP sigmoid per unit (no MXU).
    h0 = jax.nn.sigmoid(params_ref[0] * x0 + params_ref[2] * x1 + params_ref[4])
    h1 = jax.nn.sigmoid(params_ref[1] * x0 + params_ref[3] * x1 + params_ref[5])

    # Output layer.
    ot_ref[...] = params_ref[6] * h0 + params_ref[7] * h1 + params_ref[8]


def xor_forward(x, w1, b1, w2, b2):
    """x: (B, input_dim) PyTorch-layout input. Returns (B, output_dim)."""
    B, d_in = x.shape
    hidden = w1.shape[1]
    out_dim = w2.shape[1]
    assert (d_in, hidden, out_dim) == (2, 2, 1), "kernel is unrolled for the XOR module dims"

    # Pack all weights/biases into one flat scalar array (lives in SMEM).
    params = jnp.concatenate(
        [w1.reshape(-1), b1.reshape(-1), w2.reshape(-1), b2.reshape(-1)]
    ).astype(jnp.float32)

    # Lane-dense layout: batch on the last (lane) axis.
    x_t = x.T  # (d_in, B)

    cost = pl.CostEstimate(
        flops=2 * B * (d_in * hidden + hidden * out_dim),
        transcendentals=B * hidden,
        bytes_accessed=x.size * 4 + params.size * 4 + B * out_dim * 4,
    )

    # TODO(synk): if batch is ever scaled up, tile B with a grid axis marked "parallel"
    # (2 TCs on v7x) and keep the last dim a multiple of 128.
    y_t = pl.pallas_call(
        xor_mlp_kernel,
        out_shape=jax.ShapeDtypeStruct((out_dim, B), jnp.float32),
        in_specs=[
            pl.BlockSpec(memory_space=pltpu.MemorySpace.SMEM),   # packed params (scalars)
            pl.BlockSpec(memory_space=pltpu.MemorySpace.VMEM),   # x^T activations
        ],
        out_specs=pl.BlockSpec(memory_space=pltpu.MemorySpace.VMEM),
        cost_estimate=cost,
    )(params, x_t)

    return y_t.T  # (B, out_dim)


def init_params(key, input_dim=2, hidden=2, output_dim=1):
    # Mimic nn.Linear default init: U(-1/sqrt(fan_in), 1/sqrt(fan_in)), deterministic.
    k1, k2, k3, k4 = jax.random.split(key, 4)
    bound1 = 1.0 / jnp.sqrt(input_dim)
    bound2 = 1.0 / jnp.sqrt(hidden)
    # stored as (in, out) so y = x @ W + b
    w1 = jax.random.uniform(k1, (input_dim, hidden), jnp.float32, -bound1, bound1)
    b1 = jax.random.uniform(k2, (1, hidden), jnp.float32, -bound1, bound1)
    w2 = jax.random.uniform(k3, (hidden, output_dim), jnp.float32, -bound2, bound2)
    b2 = jax.random.uniform(k4, (1, output_dim), jnp.float32, -bound2, bound2)
    return w1, b1, w2, b2


if __name__ == "__main__":
    key = jax.random.PRNGKey(0)
    xkey, pkey = jax.random.split(key)

    batch, input_dim, hidden, output_dim = 8, 2, 2, 1
    x = jax.random.normal(xkey, (batch, input_dim), jnp.float32)
    w1, b1, w2, b2 = init_params(pkey, input_dim, hidden, output_dim)

    out = xor_forward(x, w1, b1, w2, b2)
    jax.block_until_ready(out)

    # pure-JAX reference check
    ref = jax.nn.sigmoid(x @ w1 + b1) @ w2 + b2
    assert out.shape == (batch, output_dim)
    assert jnp.allclose(out, ref, atol=1e-5, rtol=1e-5)

    print("KERNEL_OK")
</pallas_src>

<mosaic_0001>
module attributes {stable_mosaic.version = 11 : i64} {
  func.func @xor_mlp_kernel(%arg0: memref<9xf32, #tpu.memory_space<smem>>, %arg1: memref<2x8xf32, #tpu.memory_space<vmem>>, %arg2: memref<1x8xf32, #tpu.memory_space<vmem>>) attributes {dimension_semantics = [], scalar_prefetch = 0 : i64, scratch_operands = 0 : i64, tpu.core_type = #tpu.core_type<tc>} {
    %c0 = arith.constant 0 : index
    %c0_0 = arith.constant 0 : index
    %0 = vector.load %arg1[%c0, %c0_0] : memref<2x8xf32, #tpu.memory_space<vmem>>, vector<1x8xf32>
    %c1 = arith.constant 1 : index
    %c0_1 = arith.constant 0 : index
    %1 = vector.load %arg1[%c1, %c0_1] : memref<2x8xf32, #tpu.memory_space<vmem>>, vector<1x8xf32>
    %c0_2 = arith.constant 0 : index
    %2 = memref.load %arg0[%c0_2] : memref<9xf32, #tpu.memory_space<smem>>
    %3 = vector.broadcast %2 : f32 to vector<1x8xf32>
    %4 = arith.mulf %3, %0 : vector<1x8xf32>
    %c2 = arith.constant 2 : index
    %5 = memref.load %arg0[%c2] : memref<9xf32, #tpu.memory_space<smem>>
    %6 = vector.broadcast %5 : f32 to vector<1x8xf32>
    %7 = arith.mulf %6, %1 : vector<1x8xf32>
    %8 = arith.addf %4, %7 : vector<1x8xf32>
    %c4 = arith.constant 4 : index
    %9 = memref.load %arg0[%c4] : memref<9xf32, #tpu.memory_space<smem>>
    %10 = vector.broadcast %9 : f32 to vector<1x8xf32>
    %11 = arith.addf %8, %10 : vector<1x8xf32>
    %12 = arith.negf %11 : vector<1x8xf32>
    %13 = math.exp %12 : vector<1x8xf32>
    %cst = arith.constant 1.000000e+00 : f32
    %14 = vector.broadcast %cst : f32 to vector<1x8xf32>
    %15 = arith.addf %14, %13 : vector<1x8xf32>
    %16 = arith.divf %14, %15 : vector<1x8xf32>
    %c1_3 = arith.constant 1 : index
    %17 = memref.load %arg0[%c1_3] : memref<9xf32, #tpu.memory_space<smem>>
    %18 = vector.broadcast %17 : f32 to vector<1x8xf32>
    %19 = arith.mulf %18, %0 : vector<1x8xf32>
    %c3 = arith.constant 3 : index
    %20 = memref.load %arg0[%c3] : memref<9xf32, #tpu.memory_space<smem>>
    %21 = vector.broadcast %20 : f32 to vector<1x8xf32>
    %22 = arith.mulf %21, %1 : vector<1x8xf32>
    %23 = arith.addf %19, %22 : vector<1x8xf32>
    %c5 = arith.constant 5 : index
    %24 = memref.load %arg0[%c5] : memref<9xf32, #tpu.memory_space<smem>>
    %25 = vector.broadcast %24 : f32 to vector<1x8xf32>
    %26 = arith.addf %23, %25 : vector<1x8xf32>
    %27 = arith.negf %26 : vector<1x8xf32>
    %28 = math.exp %27 : vector<1x8xf32>
    %cst_4 = arith.constant 1.000000e+00 : f32
    %29 = vector.broadcast %cst_4 : f32 to vector<1x8xf32>
    %30 = arith.addf %29, %28 : vector<1x8xf32>
    %31 = arith.divf %29, %30 : vector<1x8xf32>
    %c6 = arith.constant 6 : index
    %32 = memref.load %arg0[%c6] : memref<9xf32, #tpu.memory_space<smem>>
    %33 = vector.broadcast %32 : f32 to vector<1x8xf32>
    %34 = arith.mulf %33, %16 : vector<1x8xf32>
    %c7 = arith.constant 7 : index
    %35 = memref.load %arg0[%c7] : memref<9xf32, #tpu.memory_space<smem>>
    %36 = vector.broadcast %35 : f32 to vector<1x8xf32>
    %37 = arith.mulf %36, %31 : vector<1x8xf32>
    %38 = arith.addf %34, %37 : vector<1x8xf32>
    %c8 = arith.constant 8 : index
    %39 = memref.load %arg0[%c8] : memref<9xf32, #tpu.memory_space<smem>>
    %40 = vector.broadcast %39 : f32 to vector<1x8xf32>
    %41 = arith.addf %38, %40 : vector<1x8xf32>
    %c0_5 = arith.constant 0 : index
    %c0_6 = arith.constant 0 : index
    %42 = vector.load %arg2[%c0_5, %c0_6] : memref<1x8xf32, #tpu.memory_space<vmem>>, vector<1x8xf32>
    tpu.vector_store %arg2[%c0_5, %c0_6], %41 {strides = array<i32>} : memref<1x8xf32, #tpu.memory_space<vmem>>, vector<1x8xf32>,
    return
  }
}

</mosaic_0001>

<llo_original>
// kernel: tpu_custom_call.1
$region0: #{tpu_custom_call.1}
  #allocation0 [shape = 'u32[]', space=smem, size = 0x4, offset = 0x4, fixed_abs, tag = 'smem constant byte address 0x4 - core index']
  #allocation1 [shape = 'u32[144,128]{1,0:T(1,128)}', space=vmem, size = 0x12000, scoped, tag = 'internal scratch']
  %s0 = inlined_call_operand.hbm [shape: f32[9], index: 0, kind: input, shape index: {}]
  %s1 = inlined_call_operand.vmem [shape: f32[2,8], index: 1, kind: input, shape index: {}]
  %s2 = inlined_call_operand.hbm [shape: f32[1,8], index: 2, kind: output, shape index: {}]
  %s3 = sld [smem:[#allocation0]]
  $region22: #{tpu_custom_call.1} parent=0
    _
  %s5 = ssub.s32 1, %s3
  %s6 = scalar_select 0, %s5, %s3
  $region1: #{tpu_custom_call.1} parent=0
    #allocation2 [shape = 'u8[512]{0}', space=smem, size = 0x200, scoped, tag = 'input window, operand 0, single buffered']
    #allocation3 [shape = 's32[1]{0}', space=sflag, size = 0x4, scoped, tag = 'scoped memory for tpu_custom_call.1']
    #allocation4 [shape = 's32[1]{0}', space=sflag, size = 0x4, scoped, tag = 'scoped memory for tpu_custom_call.1']
    #allocation5 [shape = 'u8[512]{0}', space=vmem, size = 0x400, scoped, tag = 'output window, operand 0, single buffered']
    %7 = vsyncpa [#allocation4], 0
    %8 = vsyncpa [#allocation3], 0
    // Predicated region
    $region2: #{tpu_custom_call.1} parent=1 // pred_check
      _
    $region3: #{tpu_custom_call.1} parent=1 // pred_check_branch
      %10 = sbr.rel (0) target = $region5
    $region4: #{tpu_custom_call.1} parent=1 // pred_region
      %s12 = ssub.s32 16, 16
      %13 = vsyncadd [#allocation4], %s12
      %16 = dma.hbm_to_smem %s0, 16, [#allocation2], [#allocation4]
    $region5: #{tpu_custom_call.1} parent=1 // pred_fallthru
      _
    // Predicated region
    $region6: #{tpu_custom_call.1} parent=1 // pred_check
      _
    $region7: #{tpu_custom_call.1} parent=1 // pred_check_branch
      %18 = sbr.rel (0) target = $region9
    $region8: #{tpu_custom_call.1} parent=1 // pred_region
      _
    $region9: #{tpu_custom_call.1} parent=1 // pred_fallthru
      _
    // Predicated region
    $region10: #{tpu_custom_call.1} parent=1 // pred_check
      _
    $region11: #{tpu_custom_call.1} parent=1 // pred_check_branch
      %20 = sbr.rel (0) target = $region13
    $region12: #{tpu_custom_call.1} parent=1 // pred_region
      %21 = dma.done [#allocation4], 16
    $region13: #{tpu_custom_call.1} parent=1 // pred_fallthru
      _
    %22 = sfence
    %v23 = vld [vmem:[%s1] sm:$0x1]
    %v24 = vld [vmem:[%s1 + $0x1] sm:$0x1]
    %s25 = sld [smem:[#allocation2]]
    %v26 = vstv %s25
    %v27 = vmul.f32 %v26, %v23
    %s28 = sld [smem:[#allocation2 + $0x2]]
    %v29 = vstv %s28
    %v30 = vmul.f32 %v29, %v24
    %v31 = vadd.f32 %v27, %v30
    %s32 = sld [smem:[#allocation2 + $0x4]]
    %v33 = vstv %s32
    %v34 = vadd.f32 %v31, %v33
    %v35 = vxor.u32 %v34, 2147483648
    %v36 = vmul.f32 %v35, 1.442695
    %v37 = vpow.pop %v36
    %v38 = vadd.f32 %v37, 1.0
    %v39 = vrcp.pop %v38
    %v40 = vmul.f32 1.0, %v39
    %s41 = sld [smem:[#allocation2 + $0x1]]
    %v42 = vstv %s41
    %v43 = vmul.f32 %v42, %v23
    %s44 = sld [smem:[#allocation2 + $0x3]]
    %v45 = vstv %s44
    %v46 = vmul.f32 %v45, %v24
    %v47 = vadd.f32 %v43, %v46
    %s48 = sld [smem:[#allocation2 + $0x5]]
    %v49 = vstv %s48
    %v50 = vadd.f32 %v47, %v49
    %v51 = vxor.u32 %v50, 2147483648
    %v52 = vmul.f32 %v51, 1.442695
    %v53 = vpow.pop %v52
    %v54 = vadd.f32 %v53, 1.0
    %v55 = vrcp.pop %v54
    %v56 = vmul.f32 1.0, %v55
    %s57 = sld [smem:[#allocation2 + $0x6]]
    %v58 = vstv %s57
    %v59 = vmul.f32 %v58, %v40
    %s60 = sld [smem:[#allocation2 + $0x7]]
    %v61 = vstv %s60
    %v62 = vmul.f32 %v61, %v56
    %v63 = vadd.f32 %v59, %v62
    %s64 = sld [smem:[#allocation2 + $0x8]]
    %v65 = vstv %s64
    %v66 = vadd.f32 %v63, %v65
    %vm67 = vcmask 57344
    %68 = vst.msk [vmem:[#allocation5] sm:$0x1] %vm67, %v66
    // Predicated region
    $region14: #{tpu_custom_call.1} parent=1 // pred_check
      _
    $region15: #{tpu_custom_call.1} parent=1 // pred_check_branch
      %70 = sbr.rel (0) target = $region17
    $region16: #{tpu_custom_call.1} parent=1 // pred_region
      %s72 = ssub.s32 16, 16
      %73 = vsyncadd [#allocation3], %s72
      %s75 = sshll.u32 [#allocation5], 4
      %s76 = int_to_ptr.vmem [resolvable:$true] %s75
      %78 = dma.vmem_to_hbm [thread:$0]  %s76, 16, %s2, [#allocation3]
    $region17: #{tpu_custom_call.1} parent=1 // pred_fallthru
      _
    // Predicated region
    $region18: #{tpu_custom_call.1} parent=1 // pred_check
      _
    $region19: #{tpu_custom_call.1} parent=1 // pred_check_branch
      %80 = sbr.rel (0) target = $region21
    $region20: #{tpu_custom_call.1} parent=1 // pred_region
      %81 = dma.done [#allocation3], 16
    $region21: #{tpu_custom_call.1} parent=1 // pred_fallthru
      _
    %82 = vsyncpa [#allocation3], 1
    %83 = vsyncpa [#allocation4], 1

</llo_original>
